<compile_context>
chip_gen: v7x
topology: tpu7x:2x2x1
jax: 0.10.0
libtpu: 0.0.40
codegen_flags: <defaults>
</compile_context>

<pallas_src>
import jax
import jax.numpy as jnp
from jax.experimental import pallas as pl
from jax.experimental.pallas import tpu as pltpu


def _preemphasis_kernel(w_ref, x_ref, prev0_ref, o_ref, carry_ref):
    # w_ref:     SMEM (2,) f32 scalar-prefetch -> [w0, w1] = [-coeff, 1.0]
    # x_ref:     VMEM (b_block, tile_t)  input tile
    # prev0_ref: VMEM (b_block, 1)       per-row "previous sample" for t == 0
    # o_ref:     VMEM (b_block, tile_t)  output tile
    # carry_ref: VMEM (b_block, 1) f32 scratch, persists across grid steps
    t = pl.program_id(1)
    f32 = jnp.float32

    x = x_ref[...].astype(f32)
    w0 = w_ref[0].astype(f32)   # -coeff
    w1 = w_ref[1].astype(f32)   # 1.0

    # prev[:, j] = x[:, j-1] within this tile (column 0 wraps; fixed below).
    prev = pltpu.roll(x, shift=1, axis=1)

    # Column-0 "previous sample": reflect / sub-row boundary value on the first
    # time tile, carried last sample of the previous tile otherwise.  where()
    # discards the unselected branch, so the uninitialized carry at t == 0 is
    # harmless.
    prev_col = jnp.where(t == 0, prev0_ref[...].astype(f32), carry_ref[...])
    lane = jax.lax.broadcasted_iota(jnp.int32, x.shape, 1)
    prev = jnp.where(lane == 0, prev_col, prev)

    # Single dense store (no masked 1-lane overwrite of the output block).
    o_ref[...] = (w1 * x + w0 * prev).astype(o_ref.dtype)

    # Carry this tile's last sample into the next time tile of the same batch
    # block.  At the last (possibly partial) tile this is garbage, but the next
    # grid step starts at t == 0 of a new batch block and ignores it.
    carry_ref[...] = x[:, x.shape[1] - 1:]


def audio_pre_emphasis(audio, w, *, tile_t=None, b_block=None,
                       target_tile_bytes=2 << 20):
    """Pre-emphasis filter.

    audio: (B, T) float array.
    w:     (2,)   float32 = [-coeff, 1.0]  (the module's conv1d weight, flattened)
    """
    B, T = audio.shape
    assert T >= 2, "reflect padding requires T >= 2 (same as PyTorch)"
    dtype = audio.dtype
    itemsize = jnp.dtype(dtype).itemsize

    # ---- Pack small batches onto full sublanes: (B, T) -> (B*k, T//k) -------
    sub = {4: 8, 2: 16, 1: 32}.get(itemsize, 8)      # native sublane packing
    k = 1
    if B < sub:
        k_min = -(-sub // B)                          # ceil(sub / B)
        for cand in range(k_min, k_min + 16):
            if T % cand == 0 and T // cand >= 256:
                k = cand
                break
    B2, T2 = B * k, T // k
    x2 = audio.reshape(B2, T2)                        # free row-major reinterpretation

    # "previous sample" for column 0 of each (sub-)row, built from a couple of
    # (B2, 1) slices — negligible HBM traffic compared to the B*T stream:
    #   first sub-row of an original row -> reflect value  audio[b, 1]
    #   later sub-rows                   -> last sample of the sub-row above
    refl = x2[:, 1:2]
    if k == 1:
        prev0 = refl
    else:
        last = x2[:, T2 - 1:T2]
        above = jnp.concatenate([refl[:1], last[:-1]], axis=0)
        sub_row = (jnp.arange(B2, dtype=jnp.int32) % k)[:, None]
        prev0 = jnp.where(sub_row == 0, refl, above)

    # ---- Tiling --------------------------------------------------------------
    if b_block is None:
        b_block = min(B2, 256)
        if B2 >= sub:
            b_block = max(sub, (b_block // sub) * sub)
    b_block = int(min(b_block, B2))

    if tile_t is None:
        # ~2 MiB blocks, but never let large B shrink the DMA row length below
        # 2048 lanes (8 KiB contiguous per row); batch blocking bounds VMEM.
        # Live VMEM ~ 2 bufs * (in + out) * 2 MiB = 8 MiB (< v5e's 16 MiB,
        # < v6e/v7x's 32 MiB scoped defaults).
        bytes_per_col = max(1, b_block * itemsize)
        tile_t = (target_tile_bytes // bytes_per_col) // 128 * 128
        tile_t = max(tile_t, 2048)
    tile_t = int(tile_t)
    tile_t = min(tile_t, pl.cdiv(T2, 128) * 128)
    tile_t = max(128, (tile_t // 128) * 128)

    nb = pl.cdiv(B2, b_block)
    nt = pl.cdiv(T2, tile_t)

    grid_spec = pltpu.PrefetchScalarGridSpec(
        num_scalar_prefetch=1,        # w -> SMEM (also visible to index_maps)
        grid=(nb, nt),
        in_specs=[
            pl.BlockSpec((b_block, tile_t), lambda bb, t, w: (bb, t)),
            pl.BlockSpec((b_block, 1), lambda bb, t, w: (bb, 0)),
        ],
        out_specs=pl.BlockSpec((b_block, tile_t), lambda bb, t, w: (bb, t)),
        scratch_shapes=[pltpu.VMEM((b_block, 1), jnp.float32)],
    )

    out = pl.pallas_call(
        _preemphasis_kernel,
        out_shape=jax.ShapeDtypeStruct((B2, T2), dtype),
        grid_spec=grid_spec,
        compiler_params=pltpu.CompilerParams(
            # Batch blocks are independent (carry reset at t == 0) -> parallel
            # (v7x 2-TC sharding); time carries state -> arbitrary.
            dimension_semantics=("parallel", "arbitrary"),
        ),
        cost_estimate=pl.CostEstimate(
            flops=3 * B * T,
            transcendentals=0,
            bytes_accessed=2 * B * T * itemsize,
        ),
    )(w, x2, prev0)

    return out.reshape(B, T)


if __name__ == "__main__":
    coeff = 0.97
    # Deterministic "parameter" init, same as the module's __init__:
    # w = [-coeff, 1.0]  (PyTorch stores it as (1, 1, 2); flattened here).
    w = jnp.array([-coeff, 1.0], dtype=jnp.float32)

    def reference(a, c=coeff):
        a = a.astype(jnp.float32)
        padded = jnp.concatenate([a[:, 1:2], a], axis=1)   # reflect-pad left by 1
        return (-c) * padded[:, :-1] + 1.0 * padded[:, 1:]

    key = jax.random.PRNGKey(0)
    k1, k2, k3, k4 = jax.random.split(key, 4)

    # Case 1: multiple batch blocks + multiple time tiles (cross-tile carry +
    # parallel batch axis).
    a1 = jax.random.normal(k1, (16, 1024), dtype=jnp.float32)
    o1 = jax.block_until_ready(audio_pre_emphasis(a1, w, tile_t=256, b_block=8))
    assert o1.shape == a1.shape
    assert jnp.allclose(o1, reference(a1), atol=1e-5, rtol=1e-5)

    # Case 2: small batch + ragged T (sublane-packing reshape, sub-row boundary
    # prev0 path, masked partial last block, auto tile sizing).
    a2 = jax.random.normal(k2, (4, 1000), dtype=jnp.float32)
    o2 = jax.block_until_ready(audio_pre_emphasis(a2, w))
    assert o2.shape == a2.shape
    assert jnp.allclose(o2, reference(a2), atol=1e-5, rtol=1e-5)

    # Case 3: ragged in both batch and time (partial blocks on both grid axes +
    # multi-tile carry).
    a3 = jax.random.normal(k3, (10, 700), dtype=jnp.float32)
    o3 = jax.block_until_ready(audio_pre_emphasis(a3, w, tile_t=256, b_block=8))
    assert o3.shape == a3.shape
    assert jnp.allclose(o3, reference(a3), atol=1e-5, rtol=1e-5)

    # Case 4: bfloat16 input (f32 compute inside the kernel, cast on store).
    a4 = jax.random.normal(k4, (16, 512), dtype=jnp.bfloat16)
    o4 = jax.block_until_ready(audio_pre_emphasis(a4, w, tile_t=256))
    assert o4.shape == a4.shape and o4.dtype == jnp.bfloat16
    assert jnp.allclose(o4.astype(jnp.float32), reference(a4), atol=5e-2)

    print("KERNEL_OK")
</pallas_src>

<mosaic_0001>
module attributes {stable_mosaic.version = 11 : i64} {
  func.func @_preemphasis_kernel(%arg0: i32, %arg1: i32, %arg2: memref<2xf32, #tpu.memory_space<smem>>, %arg3: memref<8x256xf32, #tpu.memory_space<vmem>>, %arg4: memref<8x1xf32, #tpu.memory_space<vmem>>, %arg5: memref<8x256xf32, #tpu.memory_space<vmem>>, %arg6: memref<8x1xf32, #tpu.memory_space<vmem>>) attributes {dimension_semantics = [#tpu.dimension_semantics<parallel>, #tpu.dimension_semantics<arbitrary>], iteration_bounds = array<i64: 2, 4>, scalar_prefetch = 1 : i64, scratch_operands = 1 : i64, tpu.core_type = #tpu.core_type<tc>, window_params = [{transform_indices = @transform_0, window_bounds = array<i64: 8, 256>}, {transform_indices = @transform_1, window_bounds = array<i64: 8, 1>}, {transform_indices = @transform_2, window_bounds = array<i64: 8, 256>}]} {
    %c0 = arith.constant 0 : index
    %c0_0 = arith.constant 0 : index
    %0 = vector.load %arg3[%c0, %c0_0] : memref<8x256xf32, #tpu.memory_space<vmem>>, vector<8x256xf32>
    %c0_1 = arith.constant 0 : index
    %1 = memref.load %arg2[%c0_1] : memref<2xf32, #tpu.memory_space<smem>>
    %c1 = arith.constant 1 : index
    %2 = memref.load %arg2[%c1] : memref<2xf32, #tpu.memory_space<smem>>
    %c1_i32 = arith.constant 1 : i32
    %3 = tpu.dynamic_rotate %0 by %c1_i32 dim 1 : vector<8x256xf32>, i32 -> vector<8x256xf32>
    %c0_i32 = arith.constant 0 : i32
    %4 = arith.cmpi eq, %arg1, %c0_i32 : i32
    %c0_2 = arith.constant 0 : index
    %c0_3 = arith.constant 0 : index
    %5 = vector.load %arg4[%c0_2, %c0_3] : memref<8x1xf32, #tpu.memory_space<vmem>>, vector<8x1xf32>
    %c0_4 = arith.constant 0 : index
    %c0_5 = arith.constant 0 : index
    %6 = vector.load %arg6[%c0_4, %c0_5] : memref<8x1xf32, #tpu.memory_space<vmem>>, vector<8x1xf32>
    %7 = arith.select %4, %5, %6 : vector<8x1xf32>
    %8 = tpu.iota {dimensions = array<i32: 1>} : vector<8x256xi32>
    %c0_i32_6 = arith.constant 0 : i32
    %9 = vector.broadcast %c0_i32_6 : i32 to vector<8x256xi32>
    %10 = arith.cmpi eq, %8, %9 : vector<8x256xi32>
    %11 = vector.shape_cast %7 : vector<8x1xf32> to vector<8x1xf32>
    %12 = vector.broadcast %11 : vector<8x1xf32> to vector<8x256xf32>
    %13 = arith.select %10, %12, %3 : vector<8x256xi1>, vector<8x256xf32>
    %14 = vector.broadcast %2 : f32 to vector<8x256xf32>
    %15 = arith.mulf %14, %0 : vector<8x256xf32>
    %16 = vector.broadcast %1 : f32 to vector<8x256xf32>
    %17 = arith.mulf %16, %13 : vector<8x256xf32>
    %18 = arith.addf %15, %17 : vector<8x256xf32>
    %c0_7 = arith.constant 0 : index
    %c0_8 = arith.constant 0 : index
    %19 = vector.load %arg5[%c0_7, %c0_8] : memref<8x256xf32, #tpu.memory_space<vmem>>, vector<8x256xf32>
    tpu.vector_store %arg5[%c0_7, %c0_8], %18 {strides = array<i32>} : memref<8x256xf32, #tpu.memory_space<vmem>>, vector<8x256xf32>,
    %20 = vector.extract_strided_slice %0 {offsets = [0, 255], sizes = [8, 1], strides = [1, 1]} : vector<8x256xf32> to vector<8x1xf32>
    %c0_9 = arith.constant 0 : index
    %c0_10 = arith.constant 0 : index
    %21 = vector.load %arg6[%c0_9, %c0_10] : memref<8x1xf32, #tpu.memory_space<vmem>>, vector<8x1xf32>
    tpu.vector_store %arg6[%c0_9, %c0_10], %20 {strides = array<i32>} : memref<8x1xf32, #tpu.memory_space<vmem>>, vector<8x1xf32>,
    return
  }
  func.func @transform_0(%arg0: i32, %arg1: i32, %arg2: memref<2xf32, #tpu.memory_space<smem>>) -> (i32, i32) {
    %c0_i32 = arith.constant 0 : i32
    return %arg0, %arg1 : i32, i32
  }
  func.func @transform_1(%arg0: i32, %arg1: i32, %arg2: memref<2xf32, #tpu.memory_space<smem>>) -> (i32, i32) {
    %c0_i32 = arith.constant 0 : i32
    %c0_i32_0 = arith.constant 0 : i32
    return %arg0, %c0_i32 : i32, i32
  }
  func.func @transform_2(%arg0: i32, %arg1: i32, %arg2: memref<2xf32, #tpu.memory_space<smem>>) -> (i32, i32) {
    %c0_i32 = arith.constant 0 : i32
    return %arg0, %arg1 : i32, i32
  }
}

</mosaic_0001>

<llo_original>
// kernel: tpu_custom_call.1
$region0: #{tpu_custom_call.1}
  #allocation0 [shape = 'u32[]', space=smem, size = 0x4, offset = 0x4, fixed_abs, tag = 'smem constant byte address 0x4 - core index']
  #allocation1 [shape = 'u32[144,128]{1,0:T(1,128)}', space=vmem, size = 0x12000, scoped, tag = 'internal scratch']
  #allocation2 [shape = 'f32[8,1]{1,0:T(8,128)}', space=vmem, size = 0x1000, scoped, tag = 'scratch operand']
  #allocation3 [shape = 's32[1]{0}', space=sflag, size = 0x4, scoped, tag = 'scoped memory for tpu_custom_call.1']
  #allocation4 [shape = 'u8[512]{0}', space=smem, size = 0x200, scoped, tag = 'prefetched SMEM operand 0']
  %s0 = inlined_call_operand.vmem [shape: f32[2], index: 0, kind: input, shape index: {}]
  %s1 = inlined_call_operand.hbm [shape: f32[16,1024], index: 1, kind: input, shape index: {}]
  %s2 = inlined_call_operand.vmem [shape: f32[16,1], index: 2, kind: input, shape index: {}]
  %s3 = inlined_call_operand.hbm [shape: f32[16,1024], index: 3, kind: output, shape index: {}]
  %s4 = sld [smem:[#allocation0]]
  $region45: #{tpu_custom_call.1} parent=0
    _
  %s6 = ssub.s32 1, %s4
  %s7 = scalar_select 0, %s6, %s4
  %s8 = sshll.u32 %s0, 4
  %s9 = int_to_ptr.vmem [resolvable:$true] %s8
  %11 = dma.vmem_to_smem %s9, 16, [#allocation4], [#allocation3]
  %12 = dma.done [#allocation3], 16
  %13 = sfence
  $region1: #{tpu_custom_call.1} parent=0
    #allocation5 [shape = 'u8[16384]{0}', space=vmem, size = 0x4000, scoped, tag = 'input window, operand 1']
    #allocation6 [shape = 's32[2]{0}', space=sflag, size = 0x8, scoped, tag = 'scoped memory for tpu_custom_call.1']
    #allocation7 [shape = 's32[2]{0}', space=sflag, size = 0x8, scoped, tag = 'scoped memory for tpu_custom_call.1']
    #allocation8 [shape = 'u8[16384]{0}', space=vmem, size = 0x4000, scoped, tag = 'output window, operand 0']
    %14 = vsyncpa [#allocation6], 0
    %s15 = scalar_lea.sflag [#allocation6], 1
    %16 = vsyncpa %s15, 0
    %17 = vsyncpa [#allocation7], 0
    %s18 = scalar_lea.sflag [#allocation7], 1
    %19 = vsyncpa %s18, 0
    loop: start=0, step=1, limit=10
    $region2: #{tpu_custom_call.1} parent=1 // loop_pre_header
      _
    $region3: #{tpu_custom_call.1} parent=1 // loop_header
      %s21 = sphi 0, %s25
      %p22 = scmp.ge.s32.totalorder %s21, 10
      %s28 = sphi 0, %s40
      %s29 = sphi 0, %s36
      %s30 = sphi 0, %s28
      %s31 = sphi 0, %s29
      %s32 = sphi 0, %s30
      %s33 = sphi 0, %s31
      %s45 = sphi 0, %s47
      %s48 = sphi 0, %s45
      %s49 = sphi 0, %s48
      %s65 = sphi 0, %s49
      %s71 = sphi 0, %s73
      %s74 = sphi 0, %s71
      %s75 = sphi 0, %s74
      %s91 = sphi 0, %s75
      %s99 = sphi 0, %s101
      %s102 = sphi 0, %s99
      %s103 = sphi 0, %s102
      %s119 = sphi 0, %s103
    $region4: #{tpu_custom_call.1} parent=1 // loop_header_branch
      %24 = sbr.rel (%p22) target = $region8
    $region5: #{tpu_custom_call.1} parent=1 // loop_body
      %s26 = ssub.s32 %s21, 1
      %s27 = ssub.s32 %s21, 2
      %s34 = sadd.s32 1, %s29
      %p35 = scmp.ge.s32.totalorder %s34, 4
      %s36 = scalar_select %p35, 0, %s34
      %s37 = sadd.s32 1, %s28
      %s38 = scalar_select %p35, %s37, %s28
      %p39 = scmp.ge.s32.totalorder %s38, 2
      %s40 = scalar_select %p39, 0, %s38
      %s41 = ssub.s32 %s28, %s40
      %s42 = ssub.s32 %s29, %s36
      %s43 = sor.u32 %s41, %s42
      %p44 = scmp.eq.s32.totalorder %s43, 0
      %s46 = sadd.s32 %s45, 1
      %s47 = scalar_select %p44, %s45, %s46
      %p50 = pneg %p44
      %p51 = scmp.eq.s32.totalorder %s21, 7
      %p52 = por %p50, %p51
      %p53 = scmp.ne.s32.totalorder %s45, %s48
      %p54 = scmp.eq.s32.totalorder %s21, 0
      %p55 = por %p53, %p54
      %p56 = scmp.ne.s32.totalorder %s45, %s48
      %p57 = scmp.eq.s32.totalorder %s26, 7
      %p58 = por %p56, %p57
      %p59 = scmp.ne.s32.totalorder %s48, %s49
      %p60 = scmp.eq.s32.totalorder %s26, 0
      %p61 = por %p59, %p60
      %p62 = scmp.ne.s32.totalorder %s48, %s49
      %p63 = scmp.eq.s32.totalorder %s27, 7
      %p64 = por %p62, %p63
      %p66 = scmp.ne.s32.totalorder %s49, %s65
      %p67 = scmp.eq.s32.totalorder %s27, 0
      %p68 = por %p66, %p67
      %s69 = ssub.s32 %s28, %s40
      %p70 = scmp.eq.s32.totalorder %s69, 0
      %s72 = sadd.s32 %s71, 1
      %s73 = scalar_select %p70, %s71, %s72
      %p76 = pneg %p70
      %p77 = scmp.eq.s32.totalorder %s21, 7
      %p78 = por %p76, %p77
      %p79 = scmp.ne.s32.totalorder %s71, %s74
      %p80 = scmp.eq.s32.totalorder %s21, 0
      %p81 = por %p79, %p80
      %p82 = scmp.ne.s32.totalorder %s71, %s74
      %p83 = scmp.eq.s32.totalorder %s26, 7
      %p84 = por %p82, %p83
      %p85 = scmp.ne.s32.totalorder %s74, %s75
      %p86 = scmp.eq.s32.totalorder %s26, 0
      %p87 = por %p85, %p86
      %p88 = scmp.ne.s32.totalorder %s74, %s75
      %p89 = scmp.eq.s32.totalorder %s27, 7
      %p90 = por %p88, %p89
      %p92 = scmp.ne.s32.totalorder %s75, %s91
      %p93 = scmp.eq.s32.totalorder %s27, 0
      %p94 = por %p92, %p93
      %s95 = ssub.s32 %s28, %s40
      %s96 = ssub.s32 %s29, %s36
      %s97 = sor.u32 %s95, %s96
      %p98 = scmp.eq.s32.totalorder %s97, 0
      %s100 = sadd.s32 %s99, 1
      %s101 = scalar_select %p98, %s99, %s100
      %p104 = pneg %p98
      %p105 = scmp.eq.s32.totalorder %s21, 7
      %p106 = por %p104, %p105
      %p107 = scmp.ne.s32.totalorder %s99, %s102
      %p108 = scmp.eq.s32.totalorder %s21, 0
      %p109 = por %p107, %p108
      %p110 = scmp.ne.s32.totalorder %s99, %s102
      %p111 = scmp.eq.s32.totalorder %s26, 7
      %p112 = por %p110, %p111
      %p113 = scmp.ne.s32.totalorder %s102, %s103
      %p114 = scmp.eq.s32.totalorder %s26, 0
      %p115 = por %p113, %p114
      %p116 = scmp.ne.s32.totalorder %s102, %s103
      %p117 = scmp.eq.s32.totalorder %s27, 7
      %p118 = por %p116, %p117
      %p120 = scmp.ne.s32.totalorder %s103, %s119
      %p121 = scmp.eq.s32.totalorder %s27, 0
      %p122 = por %p120, %p121
      %p123 = scmp.le.s32.totalorder 1, %s21
      %p124 = scmp.lt.s32.totalorder %s21, 9
      %p125 = pnand %p123, %p124
      %p126 = pneg %p125
      // Predicated region
      $region9: #{tpu_custom_call.1} parent=5 // pred_check
        _
      $region10: #{tpu_custom_call.1} parent=5 // pred_check_branch
        %128 = sbr.rel (%p125) target = $region12
      $region11: #{tpu_custom_call.1} parent=5 // pred_region
        %s129 = ssub.s32 %s21, 1
      $region12: #{tpu_custom_call.1} parent=5 // pred_fallthru
        _
      %p130 = scmp.lt.s32.totalorder %s21, 8
      // Predicated region
      $region13: #{tpu_custom_call.1} parent=5 // pred_check
        %p131 = pneg %p130
      $region14: #{tpu_custom_call.1} parent=5 // pred_check_branch
        %133 = sbr.rel (%p131) target = $region16
      $region15: #{tpu_custom_call.1} parent=5 // pred_region
        // Predicated region
        $region17: #{tpu_custom_call.1} parent=15 // pred_check
          %p134 = pneg %p55
        $region18: #{tpu_custom_call.1} parent=15 // pred_check_branch
          %136 = sbr.rel (%p134) target = $region20
        $region19: #{tpu_custom_call.1} parent=15 // pred_region
          %s137 = sand.u32 %s45, 1
          %s138 = scalar_lea.sflag [#allocation6], %s137
          %s139 = sand.u32 %s45, 1
          %s140 = smul.addr %s139, 16
          %s141 = scalar_lea.vmem [#allocation5], %s140
          %s142 = smul.u32 2, %s29
          %s144 = ssub.s32 256, 256
          %145 = vsyncadd %s138, %s144
          %s146 = smul.addr %s28, 8
          %s147 = sadd.s32 %s142, %s146
          %s148 = smul.addr %s147, 128
          %s149 = scalar_lea.hbm %s1, %s148
          %s151 = sshll.u32 %s141, 4
          %s152 = int_to_ptr.vmem [resolvable:$true] %s151
          %154 = dma.hbm_to_vmem [thread:$0]  %s149, 256, %s152, %s138
        $region20: #{tpu_custom_call.1} parent=15 // pred_fallthru
          _
        // Predicated region
        $region21: #{tpu_custom_call.1} parent=15 // pred_check
          %p155 = pneg %p81
        $region22: #{tpu_custom_call.1} parent=15 // pred_check_branch
          %157 = sbr.rel (%p155) target = $region24
        $region23: #{tpu_custom_call.1} parent=15 // pred_region
          %p158 = scmp.lt.s32.totalorder %s28, 1
          %s159 = scalar_select %p158, %s28, 1
          %s160 = smul.addr %s159, 8
          %s161 = scalar_lea.vmem %s2, %s160
        $region24: #{tpu_custom_call.1} parent=15 // pred_fallthru
          _
      $region16: #{tpu_custom_call.1} parent=5 // pred_fallthru
        _
      %p162 = scmp.le.s32.totalorder 1, %s21
      %p163 = scmp.lt.s32.totalorder %s21, 9
      %p164 = pnand %p162, %p163
      %p165 = pneg %p164
      // Predicated region
      $region25: #{tpu_custom_call.1} parent=5 // pred_check
        _
      $region26: #{tpu_custom_call.1} parent=5 // pred_check_branch
        %167 = sbr.rel (%p164) target = $region28
      $region27: #{tpu_custom_call.1} parent=5 // pred_region
        %s168 = ssub.s32 %s21, 1
        %s169 = sand.u32 %s48, 1
        %s170 = scalar_lea.sflag [#allocation6], %s169
        %s171 = sand.u32 %s48, 1
        %s172 = smul.addr %s171, 16
        %s173 = scalar_lea.vmem [#allocation5], %s172
        // Predicated region
        $region29: #{tpu_custom_call.1} parent=27 // pred_check
          %p174 = pneg %p61
        $region30: #{tpu_custom_call.1} parent=27 // pred_check_branch
          %176 = sbr.rel (%p174) target = $region32
        $region31: #{tpu_custom_call.1} parent=27 // pred_region
          %177 = dma.done %s170, 256
        $region32: #{tpu_custom_call.1} parent=27 // pred_fallthru
          _
        %s178 = sand.u32 %s48, 1
        %s179 = scalar_lea.sflag [#allocation6], %s178
        %s180 = sand.u32 %s48, 1
        %s181 = smul.addr %s180, 16
        %s182 = scalar_lea.vmem [#allocation5], %s181
        %p183 = pneg %p61
        %p184 = pneg %p58
        %p185 = scmp.lt.s32.totalorder %s30, 1
        %s186 = scalar_select %p185, %s30, 1
        %s187 = smul.addr %s186, 8
        %s188 = scalar_lea.vmem %s2, %s187
        %p189 = pneg %p87
        %p190 = pneg %p84
        %p191 = pneg %p115
        %p192 = pneg %p112
        %s193 = sand.u32 %s102, 1
        %s194 = scalar_lea.sflag [#allocation7], %s193
        %s195 = sand.u32 %s102, 1
        %s196 = smul.addr %s195, 16
        %s197 = scalar_lea.vmem [#allocation8], %s196
        %s198 = smul.u32 2, %s31
        %p199 = scmp.lt.s32.totalorder %s30, 1
        %s200 = scalar_select %p199, %s30, 1
        %s201 = smul.addr %s200, 8
        %s202 = scalar_lea.vmem %s2, %s201
        %s203 = smul.u32 2, %s31
        %v204 = vld [vmem:[%s173] sm:$0xff]
        %v205 = vld [vmem:[%s173 + $0x8] sm:$0xff]
        %s206 = sld [smem:[#allocation4]]
        %s207 = sld [smem:[#allocation4 + $0x1]]
        %208 = vrot.lane.b32.xlu0 %v204, 1
        %v209 = vpop.permute.xlu0 %208
        %210 = vrot.lane.b32.xlu0 %v205, 1
        %v211 = vpop.permute.xlu0 %210
        %v212 = vlaneseq
        %v213 = vand.u32 %v212, 127
        %vm214 = vcmp.lt.s32.totalorder %v213, 1
        %v215 = vsel %vm214, %v209, %v211
        %v216 = vsel %vm214, %v211, %v209
        %p217 = scmp.eq.s32.totalorder %s31, 0
        %v218 = vld [vmem:[%s202] sm:$0xff]
        %v219 = vld [vmem:[#allocation2] sm:$0xff]
        %s220 = scalar_select %p217, 1, 0
        %v221 = vstv %s220
        %vm222 = vcmp.eq.s32.totalorder %v221, 1
        %v223 = vsel %vm222, %v218, %v219
        %v224 = vadd.s32 %v213, 128
        %vm225 = vcmp.eq.s32.totalorder %v213, 0
        %vm226 = vcmp.eq.s32.totalorder %v224, 0
        %228 = vset.pattern.permute.xlu0 0
        %229 = vperm.xlu0 %228, %v223
        %v230 = vpop.permute.xlu0 %229
        %v232 = vsel %vm225, %v230, %v216
        %v233 = vsel %vm226, %v230, %v215
        %v234 = vstv %s207
        %v235 = vmul.f32 %v234, %v204
        %v236 = vmul.f32 %v234, %v205
        %v237 = vstv %s206
        %v238 = vmul.f32 %v237, %v232
        %v239 = vmul.f32 %v237, %v233
        %v240 = vadd.f32 %v235, %v238
        %v241 = vadd.f32 %v236, %v239
        %242 = vst [vmem:[%s197] sm:$0xff] %v240
        %243 = vst [vmem:[%s197 + $0x8] sm:$0xff] %v241
        %245 = vrot.lane.b32.xlu0 %v205, 1
        %v246 = vpop.permute.xlu0 %245
        %vm248 = vcmask 7168
        %249 = vst.msk [vmem:[#allocation2] sm:$0xff] %vm248, %v246
        %s250 = sand.u32 %s102, 1
        %s251 = scalar_lea.sflag [#allocation7], %s250
        %s252 = sand.u32 %s102, 1
        %s253 = smul.addr %s252, 16
        %s254 = scalar_lea.vmem [#allocation8], %s253
        // Predicated region
        $region33: #{tpu_custom_call.1} parent=27 // pred_check
          %p255 = pneg %p112
        $region34: #{tpu_custom_call.1} parent=27 // pred_check_branch
          %257 = sbr.rel (%p255) target = $region36
        $region35: #{tpu_custom_call.1} parent=27 // pred_region
          %s258 = smul.u32 2, %s31
          %s260 = ssub.s32 256, 256
          %261 = vsyncadd %s251, %s260
          %s262 = smul.addr %s30, 8
          %s263 = sadd.s32 %s258, %s262
          %s264 = smul.addr %s263, 128
          %s265 = scalar_lea.hbm %s3, %s264
          %s267 = sshll.u32 %s254, 4
          %s268 = int_to_ptr.vmem [resolvable:$true] %s267
          %270 = dma.vmem_to_hbm [thread:$0]  %s268, 256, %s265, %s251
        $region36: #{tpu_custom_call.1} parent=27 // pred_fallthru
          _
      $region28: #{tpu_custom_call.1} parent=5 // pred_fallthru
        _
      %p271 = scmp.le.s32.totalorder 2, %s21
      // Predicated region
      $region37: #{tpu_custom_call.1} parent=5 // pred_check
        %p272 = pneg %p271
      $region38: #{tpu_custom_call.1} parent=5 // pred_check_branch
        %274 = sbr.rel (%p272) target = $region40
      $region39: #{tpu_custom_call.1} parent=5 // pred_region
        %s275 = ssub.s32 %s21, 2
        // Predicated region
        $region41: #{tpu_custom_call.1} parent=39 // pred_check
          %p276 = pneg %p118
        $region42: #{tpu_custom_call.1} parent=39 // pred_check_branch
          %278 = sbr.rel (%p276) target = $region44
        $region43: #{tpu_custom_call.1} parent=39 // pred_region
          %s279 = sand.u32 %s103, 1
          %s280 = scalar_lea.sflag [#allocation7], %s279
          %s281 = sand.u32 %s103, 1
          %s282 = smul.addr %s281, 16
          %s283 = scalar_lea.vmem [#allocation8], %s282
          %284 = dma.done %s280, 256
        $region44: #{tpu_custom_call.1} parent=39 // pred_fallthru
          _
      $region40: #{tpu_custom_call.1} parent=5 // pred_fallthru
        _
    $region6: #{tpu_custom_call.1} parent=1 // loop_footer
      %s25 = sadd.s32 1, %s21
    $region7: #{tpu_custom_call.1} parent=1 // loop_footer_branch
      %20 = sbr.rel target = $region3
    $region8: #{tpu_custom_call.1} parent=1 // loop_exit
      _
    %285 = vsyncpa [#allocation6], 1
    %s286 = scalar_lea.sflag [#allocation6], 1
    %287 = vsyncpa %s286, 1
    %288 = vsyncpa [#allocation7], 1
    %s289 = scalar_lea.sflag [#allocation7], 1
    %290 = vsyncpa %s289, 1

</llo_original>
